<compile_context>
chip_gen: v7x
topology: tpu7x:2x2x1
jax: 0.10.0
libtpu: 0.0.40
codegen_flags: <defaults>
</compile_context>

<pallas_src>
import functools

import jax
import jax.numpy as jnp
from jax import lax
from jax.experimental import pallas as pl
from jax.experimental.pallas import tpu as pltpu


_MIB = 1024 * 1024


def _round_up(a, b):
    return ((a + b - 1) // b) * b


def _sublane(dtype_bytes):
    # Sublane packing: 8 rows for 32-bit, 16 for 16-bit, 32 for 8-bit dtypes.
    return {1: 32, 2: 16, 4: 8}.get(dtype_bytes, 8)


def _chip_info():
    """(vmem_capacity_bytes, tensorcores_per_chip) with conservative fallbacks."""
    cap = 64 * _MIB  # v7x per-TC VMEM: most conservative of the target chips
    try:
        info = pltpu.get_tpu_info()
        cap = int(getattr(info, "vmem_capacity_bytes", cap))
    except Exception:
        pass
    # 64 MiB-VMEM parts (v7x) have 2 TensorCores/chip; the 128 MiB parts
    # targeted here (v5e/v6e) have 1. Defaulting to 2 when the query fails
    # costs at most one extra ~0.35us grid step on single-core chips.
    cores = 2 if cap <= 80 * _MIB else 1
    return cap, cores


def _pick_sub_rows(d, dtype_bytes, rows_cap):
    """Rows processed per inner-loop iteration: bounds live f32 temps ~2 MiB."""
    sublane = _sublane(dtype_bytes)
    sub = (2 * _MIB) // (d * 4)
    sub = max(sublane, min(512, (sub // sublane) * sublane))
    return min(sub, rows_cap)


def _pick_tiling(n_rows, d, dtype_bytes, vmem_budget, num_cores):
    sublane = _sublane(dtype_bytes)
    rows_cap = _round_up(max(n_rows, 1), sublane)
    sub = _pick_sub_rows(d, dtype_bytes, rows_cap)

    # VMEM cost of the double-buffered in+out DMA tiles only (the f32 temps
    # are bounded separately by `sub`, so they don't shrink the DMA tile).
    bytes_per_row = 2 * 2 * d * dtype_bytes
    budget_rows = max(sub, ((vmem_budget // bytes_per_row) // sub) * sub)

    # Bytes-based per-step target: >= ~8 MiB of in+out HBM traffic per grid
    # step keeps the ~0.35us fixed per-step pipeline overhead negligible.
    target_rows = _round_up(pl.cdiv(8 * _MIB, 2 * d * dtype_bytes), sub)

    tile = min(budget_rows, max(target_rows, sub))

    # Multi-TensorCore balance (v7x): the "parallel" row grid is sharded
    # across cores, so keep >= num_cores roughly-equal grid steps.
    if num_cores > 1 and n_rows >= num_cores * sublane:
        tile = min(tile, _round_up(pl.cdiv(n_rows, num_cores), sub))

    tile = min(tile, rows_cap)
    tile = max(sub, (tile // sub) * sub)  # keep tile a multiple of sub
    return tile, sub


def _rmsnorm_kernel(x_ref, w_ref, o_ref, *, eps, inv_d, sub_rows):
    # x_ref/o_ref: (tile_rows, D); w_ref: (1, D) already in the scale dtype.
    tile_rows = x_ref.shape[0]
    n_sub = tile_rows // sub_rows  # static
    w = w_ref[...]                 # load once per grid step (VMEM-resident)

    def process(row0):
        x = x_ref[pl.ds(row0, sub_rows), :]
        xf = x.astype(jnp.float32)
        # sum(x*x) with 1/D folded into the rsqrt argument: one fewer
        # full-tile VALU pass. Lane reduce -> XLU, rsqrt -> EUP.
        s = jnp.sum(xf * xf, axis=-1, keepdims=True)
        inv = lax.rsqrt(s * inv_d + eps)
        if o_ref.dtype == jnp.float32:
            y = xf * inv * w
        else:
            # Stats stay strictly in f32; only the final scale runs on the
            # native (e.g. bf16) VPU path -> fewer VALU passes / vreg traffic.
            y = (x * w) * inv.astype(o_ref.dtype)
        o_ref[pl.ds(row0, sub_rows), :] = y.astype(o_ref.dtype)

    if n_sub <= 1:
        process(0)
    else:
        # Sub-chunk loop bounds the live f32 intermediates to sub_rows x D.
        @pl.loop(0, n_sub)
        def _(j):
            process(pl.multiple_of(j * sub_rows, sub_rows))


def rmsnorm(x, weight, eps=1e-6, *, tile_rows=None):
    """x: (..., D); weight: (D,). Returns same shape/dtype as x."""
    orig_shape = x.shape
    D = orig_shape[-1]
    x2 = x.reshape(-1, D)
    R = x2.shape[0]
    dtype_bytes = jnp.dtype(x.dtype).itemsize

    vmem_cap, num_cores = _chip_info()
    # Generation-aware DMA-tile budget: ~24 MiB on 64 MiB-VMEM v7x,
    # ~56 MiB on 128 MiB-VMEM v5e/v6e.
    vmem_budget = 56 * _MIB if vmem_cap >= 100 * _MIB else 24 * _MIB

    if tile_rows is None:
        tile_rows, sub_rows = _pick_tiling(R, D, dtype_bytes, vmem_budget,
                                           num_cores)
    else:
        sub_rows = _pick_sub_rows(D, dtype_bytes,
                                  _round_up(max(R, 1), _sublane(dtype_bytes)))
        sub_rows = min(sub_rows, tile_rows)
        if tile_rows % sub_rows != 0:
            sub_rows = tile_rows

    # Weight cast once here (f32 for f32 inputs, input dtype otherwise for the
    # native-VPU scale path) so the kernel does no per-step astype.
    scale_dtype = jnp.float32 if x.dtype == jnp.float32 else x.dtype
    w2 = weight.astype(scale_dtype).reshape(1, D)

    # No jnp.pad / out[:R] copies (each would add a full HBM pass): Pallas
    # masks the partial last block and RMSNorm is strictly row-wise, so
    # out-of-bounds tail rows are harmless and never written back.
    grid = (pl.cdiv(R, tile_rows),)

    # VMEM limit sized from what this kernel actually allocates: double-
    # buffered in+out tiles, bounded f32 temps, resident weight, plus slack.
    # NOTE: no D-tiled fallback is implemented; an extreme D whose minimal
    # sublane x D tile exceeds VMEM would fail to compile rather than run.
    vmem_limit = (4 * tile_rows * D * dtype_bytes
                  + 2 * sub_rows * D * 4
                  + 2 * D * jnp.dtype(scale_dtype).itemsize
                  + 4 * _MIB)
    vmem_limit = max(32 * _MIB, vmem_limit)
    vmem_limit = min(vmem_limit, vmem_cap - 8 * _MIB)

    kernel = functools.partial(_rmsnorm_kernel, eps=eps, inv_d=1.0 / D,
                               sub_rows=sub_rows)

    out = pl.pallas_call(
        kernel,
        out_shape=jax.ShapeDtypeStruct((R, D), x.dtype),
        grid_spec=pltpu.PrefetchScalarGridSpec(
            num_scalar_prefetch=0,
            grid=grid,
            in_specs=[
                pl.BlockSpec((tile_rows, D), lambda i: (i, 0)),
                # Weight: constant-index block, stays VMEM-resident.
                pl.BlockSpec((1, D), lambda i: (0, 0)),
            ],
            out_specs=pl.BlockSpec((tile_rows, D), lambda i: (i, 0)),
        ),
        compiler_params=pltpu.CompilerParams(
            dimension_semantics=("parallel",),
            vmem_limit_bytes=int(vmem_limit),
        ),
    )(x2, w2)

    return out.reshape(orig_shape)


def rmsnorm_reference(x, weight, eps=1e-6):
    xf = x.astype(jnp.float32)
    ms = jnp.mean(xf * xf, axis=-1, keepdims=True)
    out = xf * lax.rsqrt(ms + eps)
    return (out * weight.astype(jnp.float32)).astype(x.dtype)


if __name__ == "__main__":
    # TODO(synk): probe.log_stats is a training-time telemetry hook (identity
    # on the value); it has no Pallas equivalent and is omitted.
    key = jax.random.PRNGKey(0)
    k1, k2, k3, k4 = jax.random.split(key, 4)

    # Case 1: module-faithful small shape, weight = ones(dim) as in __init__.
    B, S, D = 2, 8, 128
    x1 = jax.random.normal(k1, (B, S, D), dtype=jnp.bfloat16)
    w1 = jnp.ones((D,), dtype=jnp.float32)
    y1 = jax.block_until_ready(rmsnorm(x1, w1, eps=1e-6))
    r1 = rmsnorm_reference(x1, w1, eps=1e-6)
    assert y1.shape == x1.shape and y1.dtype == x1.dtype
    assert jnp.allclose(y1.astype(jnp.float32), r1.astype(jnp.float32),
                        atol=2e-2, rtol=2e-2)

    # Case 2: R not a multiple of tile_rows (masked partial last block),
    # large-magnitude tail rows, non-trivial weight, multi-step grid.
    R2, D2 = 40, 256
    x2 = jax.random.normal(k2, (R2, D2), dtype=jnp.bfloat16)
    x2 = x2.at[-3:].multiply(100.0)
    w2 = (1.0 + 0.1 * jax.random.normal(k3, (D2,), dtype=jnp.float32))
    y2 = jax.block_until_ready(rmsnorm(x2, w2, eps=1e-6, tile_rows=16))
    r2 = rmsnorm_reference(x2, w2, eps=1e-6)
    assert y2.shape == x2.shape and y2.dtype == x2.dtype
    assert jnp.allclose(y2.astype(jnp.float32), r2.astype(jnp.float32),
                        atol=2e-2, rtol=2e-2)

    # Case 3: float32 path, fewer rows than one sublane tile (partial block).
    x3 = jax.random.normal(k4, (4, 384), dtype=jnp.float32)
    w3 = jnp.ones((384,), dtype=jnp.float32)
    y3 = jax.block_until_ready(rmsnorm(x3, w3, eps=1e-6))
    r3 = rmsnorm_reference(x3, w3, eps=1e-6)
    assert jnp.allclose(y3, r3, atol=1e-4, rtol=1e-4)

    print("KERNEL_OK")
</pallas_src>

<mosaic_0001>
module attributes {stable_mosaic.version = 11 : i64} {
  func.func @_rmsnorm_kernel(%arg0: i32, %arg1: memref<16x128xbf16, #tpu.memory_space<vmem>>, %arg2: memref<1x128xbf16, #tpu.memory_space<vmem>>, %arg3: memref<16x128xbf16, #tpu.memory_space<vmem>>) attributes {dimension_semantics = [#tpu.dimension_semantics<parallel>], iteration_bounds = array<i64: 1>, scalar_prefetch = 0 : i64, scratch_operands = 0 : i64, tpu.core_type = #tpu.core_type<tc>, window_params = [{transform_indices = @transform_0, window_bounds = array<i64: 16, 128>}, {pipeline_mode = #tpu.pipeline_mode<synchronous>, transform_indices = @transform_1, window_bounds = array<i64: 1, 128>}, {transform_indices = @transform_2, window_bounds = array<i64: 16, 128>}]} {
    %c0 = arith.constant 0 : index
    %c0_0 = arith.constant 0 : index
    %0 = vector.load %arg2[%c0, %c0_0] : memref<1x128xbf16, #tpu.memory_space<vmem>>, vector<1x128xbf16>
    %c0_1 = arith.constant 0 : index
    %c0_2 = arith.constant 0 : index
    %1 = vector.load %arg1[%c0_1, %c0_2] : memref<16x128xbf16, #tpu.memory_space<vmem>>, vector<16x128xbf16>
    %2 = arith.extf %1 : vector<16x128xbf16> to vector<16x128xf32>
    %3 = arith.mulf %2, %2 : vector<16x128xf32>
    %cst = arith.constant dense<0.000000e+00> : vector<16xf32>
    %4 = vector.multi_reduction <add>, %3, %cst [1] : vector<16x128xf32> to vector<16xf32>
    %5 = vector.shape_cast %4 : vector<16xf32> to vector<16x1xf32>
    %cst_3 = arith.constant 7.812500e-03 : f32
    %6 = vector.broadcast %cst_3 : f32 to vector<16x1xf32>
    %7 = arith.mulf %5, %6 : vector<16x1xf32>
    %cst_4 = arith.constant 9.99999997E-7 : f32
    %8 = vector.broadcast %cst_4 : f32 to vector<16x1xf32>
    %9 = arith.addf %7, %8 : vector<16x1xf32>
    %10 = math.rsqrt %9 : vector<16x1xf32>
    %11 = vector.broadcast %0 : vector<1x128xbf16> to vector<16x128xbf16>
    %12 = arith.mulf %1, %11 : vector<16x128xbf16>
    %13 = arith.truncf %10 : vector<16x1xf32> to vector<16x1xbf16>
    %14 = vector.broadcast %13 : vector<16x1xbf16> to vector<16x128xbf16>
    %15 = arith.mulf %12, %14 : vector<16x128xbf16>
    %c0_5 = arith.constant 0 : index
    %c0_6 = arith.constant 0 : index
    %16 = vector.load %arg3[%c0_5, %c0_6] : memref<16x128xbf16, #tpu.memory_space<vmem>>, vector<16x128xbf16>
    tpu.vector_store %arg3[%c0_5, %c0_6], %15 {strides = array<i32>} : memref<16x128xbf16, #tpu.memory_space<vmem>>, vector<16x128xbf16>,
    return
  }
  func.func @transform_0(%arg0: i32) -> (i32, i32) {
    %c0_i32 = arith.constant 0 : i32
    %c0_i32_0 = arith.constant 0 : i32
    return %arg0, %c0_i32 : i32, i32
  }
  func.func @transform_1(%arg0: i32) -> (i32, i32) {
    %c0_i32 = arith.constant 0 : i32
    %c0_i32_0 = arith.constant 0 : i32
    %c0_i32_1 = arith.constant 0 : i32
    return %c0_i32, %c0_i32_0 : i32, i32
  }
  func.func @transform_2(%arg0: i32) -> (i32, i32) {
    %c0_i32 = arith.constant 0 : i32
    %c0_i32_0 = arith.constant 0 : i32
    return %arg0, %c0_i32 : i32, i32
  }
}

</mosaic_0001>

<llo_original>
// kernel: tpu_custom_call.1
$region0: #{tpu_custom_call.1}
  #allocation0 [shape = 'u32[]', space=smem, size = 0x4, offset = 0x4, fixed_abs, tag = 'smem constant byte address 0x4 - core index']
  #allocation1 [shape = 'u32[144,128]{1,0:T(1,128)}', space=vmem, size = 0x12000, scoped, tag = 'internal scratch']
  %s0 = inlined_call_operand.hbm [shape: bf16[16,128], index: 0, kind: input, shape index: {}]
  %s1 = inlined_call_operand.vmem [shape: bf16[1,128], index: 1, kind: input, shape index: {}]
  %s2 = inlined_call_operand.hbm [shape: bf16[16,128], index: 2, kind: output, shape index: {}]
  %s3 = sld [smem:[#allocation0]]
  $region22: #{tpu_custom_call.1} parent=0
    _
  %s5 = ssub.s32 1, %s3
  %s6 = scalar_select 0, %s5, %s3
  $region1: #{tpu_custom_call.1} parent=0
    #allocation2 [shape = 'u8[4096]{0}', space=vmem, size = 0x1000, scoped, tag = 'input window, operand 0, single buffered']
    #allocation3 [shape = 's32[1]{0}', space=sflag, size = 0x4, scoped, tag = 'scoped memory for tpu_custom_call.1']
    #allocation4 [shape = 's32[1]{0}', space=sflag, size = 0x4, scoped, tag = 'scoped memory for tpu_custom_call.1']
    #allocation5 [shape = 'u8[4096]{0}', space=vmem, size = 0x1000, scoped, tag = 'output window, operand 0, single buffered']
    %7 = vsyncpa [#allocation3], 0
    %8 = vsyncpa [#allocation4], 0
    // Predicated region
    $region2: #{tpu_custom_call.1} parent=1 // pred_check
      _
    $region3: #{tpu_custom_call.1} parent=1 // pred_check_branch
      %10 = sbr.rel (0) target = $region5
    $region4: #{tpu_custom_call.1} parent=1 // pred_region
      %s12 = ssub.s32 128, 128
      %13 = vsyncadd [#allocation3], %s12
      %s14 = sshll.u32 [#allocation2], 4
      %s15 = int_to_ptr.vmem [resolvable:$true] %s14
      %20 = dma.hbm_to_vmem [thread:$0]  %s0, 128, %s15, [#allocation3], 64, 64, 4
    $region5: #{tpu_custom_call.1} parent=1 // pred_fallthru
      _
    // Predicated region
    $region6: #{tpu_custom_call.1} parent=1 // pred_check
      _
    $region7: #{tpu_custom_call.1} parent=1 // pred_check_branch
      %22 = sbr.rel (0) target = $region9
    $region8: #{tpu_custom_call.1} parent=1 // pred_region
      _
    $region9: #{tpu_custom_call.1} parent=1 // pred_fallthru
      _
    // Predicated region
    $region10: #{tpu_custom_call.1} parent=1 // pred_check
      _
    $region11: #{tpu_custom_call.1} parent=1 // pred_check_branch
      %24 = sbr.rel (0) target = $region13
    $region12: #{tpu_custom_call.1} parent=1 // pred_region
      %25 = dma.done [#allocation3], 128
    $region13: #{tpu_custom_call.1} parent=1 // pred_fallthru
      _
    %v26 = vld [vmem:[%s1] sm:$0x1]
    %v27 = vld [vmem:[#allocation2] sm:$0xf]
    %v28 = vld [vmem:[#allocation2 + $0x4] sm:$0xf]
    %v29 = vunpack.c.l.bf16 %v27
    %v30 = vunpack.c.l.bf16 %v28
    %v31 = vmul.f32 %v29, %v29
    %v32 = vmul.f32 %v30, %v30
    %33 = vadd.xlane.f32.xlu0 %v31
    %v34 = vpop.xlane.xlu0 %33
    %35 = vadd.xlane.f32.xlu0 %v32
    %v36 = vpop.xlane.xlu0 %35
    %v37 = vmul.f32 %v34, 0.0078125
    %v38 = vmul.f32 %v36, 0.0078125
    %v39 = vadd.f32 %v37, 1e-06
    %v40 = vadd.f32 %v38, 1e-06
    %v41 = vrsqrt.pop %v39
    %v42 = vrsqrt.pop %v40
    %v44 = vpack.i.b16 %v26, %v26
    %v46 = vlaneseq
    %v47 = vshrl.u32 %v46, 7
    %v48 = vsub.s32 0, %v47
    %v49 = vrot.slane %v44, %v48
    %v51 = vunpack.c.l.b16 %v49
    %v52 = vpack.c.b16 %v51, %v51
    %v54 = vmul.bf16 %v27, %v52
    %v55 = vmul.bf16 %v28, %v52
    %v56 = vpack.c.bf16 %v42, %v41
    %v59 = vunpack.c.l.s4 839922192
    %v60 = vunpack.c.0.s8 %v59
    %v61 = vlaneseq
    %v62 = vshrl.u32 %v61, 7
    %v63 = vsub.s32 %v60, %v62
    %v64 = vrot.slane %v56, %v63
    %v66 = vunpack.c.l.s4 1985246804
    %v67 = vunpack.c.0.s8 %v66
    %v68 = vlaneseq
    %v69 = vshrl.u32 %v68, 7
    %v70 = vsub.s32 %v67, %v69
    %v71 = vrot.slane %v56, %v70
    %v74 = vmul.bf16 %v54, %v64
    %v75 = vmul.bf16 %v55, %v71
    %76 = vst [vmem:[#allocation5] sm:$0xf] %v74
    %77 = vst [vmem:[#allocation5 + $0x4] sm:$0xf] %v75
    // Predicated region
    $region14: #{tpu_custom_call.1} parent=1 // pred_check
      _
    $region15: #{tpu_custom_call.1} parent=1 // pred_check_branch
      %79 = sbr.rel (0) target = $region17
    $region16: #{tpu_custom_call.1} parent=1 // pred_region
      %s81 = ssub.s32 128, 128
      %82 = vsyncadd [#allocation4], %s81
      %s83 = sshll.u32 [#allocation5], 4
      %s84 = int_to_ptr.vmem [resolvable:$true] %s83
      %89 = dma.vmem_to_hbm [thread:$0]  %s84, 128, %s2, [#allocation4], 64, 64, 4
    $region17: #{tpu_custom_call.1} parent=1 // pred_fallthru
      _
    // Predicated region
    $region18: #{tpu_custom_call.1} parent=1 // pred_check
      _
    $region19: #{tpu_custom_call.1} parent=1 // pred_check_branch
      %91 = sbr.rel (0) target = $region21
    $region20: #{tpu_custom_call.1} parent=1 // pred_region
      %92 = dma.done [#allocation4], 128
    $region21: #{tpu_custom_call.1} parent=1 // pred_fallthru
      _
    %93 = vsyncpa [#allocation3], 1
    %94 = vsyncpa [#allocation4], 1

</llo_original>
